<compile_context>
chip_gen: v7x
topology: tpu7x:2x2x1
jax: 0.10.0
libtpu: 0.0.40
codegen_flags: <defaults>
</compile_context>

<pallas_src>
import jax
import jax.numpy as jnp
from jax.experimental import pallas as pl
from jax.experimental.pallas import tpu as pltpu

_LANES = 128
_CLAMP = 20.0  # (1+e^20)^2 ~= 2.4e17; (w^2-1)/(w^2+1) rounds to 1.0 in f32


def _mish_kernel(x_ref, o_ref):
    x = x_ref[...].astype(jnp.float32)
    # mish(x) = x * tanh(softplus(x)) = x * (w^2 - 1) / (w^2 + 1), w = 1 + exp(x)
    w = 1.0 + jnp.exp(jnp.minimum(x, _CLAMP))
    w2 = w * w
    o_ref[...] = (x * ((w2 - 1.0) / (w2 + 1.0))).astype(o_ref.dtype)


def _mish_math(x):
    """Same algebraic form in plain jnp (only used for tiny unaligned tails)."""
    xf = x.astype(jnp.float32)
    w = 1.0 + jnp.exp(jnp.minimum(xf, _CLAMP))
    w2 = w * w
    return (xf * ((w2 - 1.0) / (w2 + 1.0))).astype(x.dtype)


def _sublane_quantum(dtype):
    itemsize = jnp.dtype(dtype).itemsize
    return {4: 8, 2: 16, 1: 32}.get(itemsize, 8)


def _mish_2d(x2d, *, tile_rows):
    rows, lanes = x2d.shape
    n = rows * lanes
    itemsize = jnp.dtype(x2d.dtype).itemsize
    grid = (pl.cdiv(rows, tile_rows),)
    return pl.pallas_call(
        _mish_kernel,
        out_shape=jax.ShapeDtypeStruct((rows, lanes), x2d.dtype),
        grid_spec=pltpu.PrefetchScalarGridSpec(
            num_scalar_prefetch=0,
            grid=grid,
            in_specs=[pl.BlockSpec((tile_rows, lanes), lambda i: (i, 0))],
            out_specs=pl.BlockSpec((tile_rows, lanes), lambda i: (i, 0)),
        ),
        compiler_params=pltpu.CompilerParams(
            dimension_semantics=("parallel",)),
        cost_estimate=pl.CostEstimate(
            flops=6 * n, transcendentals=n, bytes_accessed=2 * n * itemsize),
    )(x2d)


def mish(x, *, target_block_bytes=2 << 20):
    """Elementwise Mish via Pallas. Accepts any shape/dtype; returns same."""
    orig_shape = x.shape
    n = x.size
    if n == 0:
        return x

    sub = _sublane_quantum(x.dtype)            # sublane packing quantum
    itemsize = jnp.dtype(x.dtype).itemsize
    quantum = sub * _LANES                     # elements per minimal tile
    n_aligned = (n // quantum) * quantum

    # ~target_block_bytes per block; rows kept a multiple of the quantum.
    tile_rows = max(sub,
                    (target_block_bytes // (_LANES * itemsize)) // sub * sub)

    x_flat = jnp.ravel(x)

    if n_aligned == n:
        # Fast path: no pad, no slice -- reshape in, reshape out.
        rows = n // _LANES
        y2d = _mish_2d(x_flat.reshape(rows, _LANES),
                       tile_rows=min(tile_rows, rows))
        return y2d.reshape(orig_shape)

    if n_aligned == 0:
        # Tiny input: not worth a kernel launch.
        return _mish_math(x_flat).reshape(orig_shape)

    # Unaligned: Pallas on the aligned prefix, plain jnp on the small tail.
    rows = n_aligned // _LANES
    head = _mish_2d(x_flat[:n_aligned].reshape(rows, _LANES),
                    tile_rows=min(tile_rows, rows)).reshape(-1)
    tail = _mish_math(x_flat[n_aligned:])
    return jnp.concatenate([head, tail]).reshape(orig_shape)


def _mish_ref(x):
    """Numerically-stable reference (softplus + tanh), matches torch semantics."""
    xf = x.astype(jnp.float32)
    sp = jnp.maximum(xf, 0.0) + jnp.log1p(jnp.exp(-jnp.abs(xf)))
    return (xf * jnp.tanh(sp)).astype(x.dtype)


if __name__ == "__main__":
    key = jax.random.PRNGKey(0)

    # NCHW input, consistent with typical conv usage of Mish (aligned path).
    x = jax.random.normal(key, (2, 4, 16, 16), dtype=jnp.float32) * 3.0
    y = mish(x)
    jax.block_until_ready(y)
    y_ref = _mish_ref(x)
    assert y.shape == x.shape and y.dtype == x.dtype
    assert jnp.allclose(y, y_ref, atol=1e-5, rtol=1e-5)

    # Unaligned (aligned-prefix + jnp-tail) path.
    x2 = jax.random.normal(jax.random.PRNGKey(1), (3, 5, 7, 11),
                           dtype=jnp.float32) * 3.0
    y2 = mish(x2)
    jax.block_until_ready(y2)
    assert y2.shape == x2.shape and y2.dtype == x2.dtype
    assert jnp.allclose(y2, _mish_ref(x2), atol=1e-5, rtol=1e-5)

    # bf16 path (exercises the 16-row sublane quantum / packed layout).
    x3 = (jax.random.normal(jax.random.PRNGKey(2), (2, 4, 16, 16),
                            dtype=jnp.float32) * 3.0).astype(jnp.bfloat16)
    y3 = mish(x3)
    jax.block_until_ready(y3)
    assert y3.shape == x3.shape and y3.dtype == x3.dtype
    assert jnp.allclose(y3.astype(jnp.float32),
                        _mish_ref(x3).astype(jnp.float32),
                        atol=2e-2, rtol=2e-2)

    print("KERNEL_OK")
</pallas_src>

<mosaic_0001>
module attributes {stable_mosaic.version = 11 : i64} {
  func.func @_mish_kernel(%arg0: i32, %arg1: memref<16x128xf32, #tpu.memory_space<vmem>>, %arg2: memref<16x128xf32, #tpu.memory_space<vmem>>) attributes {dimension_semantics = [#tpu.dimension_semantics<parallel>], iteration_bounds = array<i64: 1>, scalar_prefetch = 0 : i64, scratch_operands = 0 : i64, tpu.core_type = #tpu.core_type<tc>, window_params = [{transform_indices = @transform_0, window_bounds = array<i64: 16, 128>}, {transform_indices = @transform_1, window_bounds = array<i64: 16, 128>}]} {
    %c0 = arith.constant 0 : index
    %c0_0 = arith.constant 0 : index
    %0 = vector.load %arg1[%c0, %c0_0] : memref<16x128xf32, #tpu.memory_space<vmem>>, vector<16x128xf32>
    %cst = arith.constant 2.000000e+01 : f32
    %1 = vector.broadcast %cst : f32 to vector<16x128xf32>
    %2 = arith.minimumf %0, %1 : vector<16x128xf32>
    %3 = math.exp %2 : vector<16x128xf32>
    %cst_1 = arith.constant 1.000000e+00 : f32
    %4 = vector.broadcast %cst_1 : f32 to vector<16x128xf32>
    %5 = arith.addf %4, %3 : vector<16x128xf32>
    %6 = arith.mulf %5, %5 : vector<16x128xf32>
    %cst_2 = arith.constant 1.000000e+00 : f32
    %7 = vector.broadcast %cst_2 : f32 to vector<16x128xf32>
    %8 = arith.subf %6, %7 : vector<16x128xf32>
    %cst_3 = arith.constant 1.000000e+00 : f32
    %9 = vector.broadcast %cst_3 : f32 to vector<16x128xf32>
    %10 = arith.addf %6, %9 : vector<16x128xf32>
    %11 = arith.divf %8, %10 : vector<16x128xf32>
    %12 = arith.mulf %0, %11 : vector<16x128xf32>
    %c0_4 = arith.constant 0 : index
    %c0_5 = arith.constant 0 : index
    %13 = vector.load %arg2[%c0_4, %c0_5] : memref<16x128xf32, #tpu.memory_space<vmem>>, vector<16x128xf32>
    tpu.vector_store %arg2[%c0_4, %c0_5], %12 {strides = array<i32>} : memref<16x128xf32, #tpu.memory_space<vmem>>, vector<16x128xf32>,
    return
  }
  func.func @transform_0(%arg0: i32) -> (i32, i32) {
    %c0_i32 = arith.constant 0 : i32
    %c0_i32_0 = arith.constant 0 : i32
    return %arg0, %c0_i32 : i32, i32
  }
  func.func @transform_1(%arg0: i32) -> (i32, i32) {
    %c0_i32 = arith.constant 0 : i32
    %c0_i32_0 = arith.constant 0 : i32
    return %arg0, %c0_i32 : i32, i32
  }
}

</mosaic_0001>

<llo_original>
// kernel: tpu_custom_call.1
$region0: #{tpu_custom_call.1}
  #allocation0 [shape = 'u32[]', space=smem, size = 0x4, offset = 0x4, fixed_abs, tag = 'smem constant byte address 0x4 - core index']
  #allocation1 [shape = 'u32[144,128]{1,0:T(1,128)}', space=vmem, size = 0x12000, scoped, tag = 'internal scratch']
  %s0 = inlined_call_operand.hbm [shape: f32[16,128], index: 0, kind: input, shape index: {}]
  %s1 = inlined_call_operand.hbm [shape: f32[16,128], index: 1, kind: output, shape index: {}]
  %s2 = sld [smem:[#allocation0]]
  $region18: #{tpu_custom_call.1} parent=0
    _
  %s4 = ssub.s32 1, %s2
  %s5 = scalar_select 0, %s4, %s2
  $region1: #{tpu_custom_call.1} parent=0
    #allocation2 [shape = 'u8[8192]{0}', space=vmem, size = 0x2000, scoped, tag = 'input window, operand 0, single buffered']
    #allocation3 [shape = 's32[1]{0}', space=sflag, size = 0x4, scoped, tag = 'scoped memory for tpu_custom_call.1']
    #allocation4 [shape = 's32[1]{0}', space=sflag, size = 0x4, scoped, tag = 'scoped memory for tpu_custom_call.1']
    #allocation5 [shape = 'u8[8192]{0}', space=vmem, size = 0x2000, scoped, tag = 'output window, operand 0, single buffered']
    %6 = vsyncpa [#allocation3], 0
    %7 = vsyncpa [#allocation4], 0
    // Predicated region
    $region2: #{tpu_custom_call.1} parent=1 // pred_check
      _
    $region3: #{tpu_custom_call.1} parent=1 // pred_check_branch
      %9 = sbr.rel (0) target = $region5
    $region4: #{tpu_custom_call.1} parent=1 // pred_region
      %s11 = ssub.s32 256, 256
      %12 = vsyncadd [#allocation3], %s11
      %s13 = sshll.u32 [#allocation2], 4
      %s14 = int_to_ptr.vmem [resolvable:$true] %s13
      %19 = dma.hbm_to_vmem [thread:$0]  %s0, 256, %s14, [#allocation3], 128, 128, 8
    $region5: #{tpu_custom_call.1} parent=1 // pred_fallthru
      _
    // Predicated region
    $region6: #{tpu_custom_call.1} parent=1 // pred_check
      _
    $region7: #{tpu_custom_call.1} parent=1 // pred_check_branch
      %21 = sbr.rel (0) target = $region9
    $region8: #{tpu_custom_call.1} parent=1 // pred_region
      %22 = dma.done [#allocation3], 256
    $region9: #{tpu_custom_call.1} parent=1 // pred_fallthru
      _
    %v23 = vld [vmem:[#allocation2] sm:$0xff]
    %v24 = vld [vmem:[#allocation2 + $0x8] sm:$0xff]
    %v25 = vmin.f32 %v23, 20.0
    %v26 = vmin.f32 %v24, 20.0
    %v27 = vmul.f32 %v25, 1.442695
    %v28 = vpow.pop %v27
    %v29 = vmul.f32 %v26, 1.442695
    %v30 = vpow.pop %v29
    %v31 = vadd.f32 %v28, 1.0
    %v32 = vadd.f32 %v30, 1.0
    %v33 = vmul.f32 %v31, %v31
    %v34 = vmul.f32 %v32, %v32
    %v35 = vsub.f32 %v33, 1.0
    %v36 = vsub.f32 %v34, 1.0
    %v37 = vadd.f32 %v33, 1.0
    %v38 = vadd.f32 %v34, 1.0
    %v39 = vrcp.pop %v37
    %v40 = vmul.f32 %v35, %v39
    %v41 = vrcp.pop %v38
    %v42 = vmul.f32 %v36, %v41
    %v43 = vmul.f32 %v23, %v40
    %v44 = vmul.f32 %v24, %v42
    %45 = vst [vmem:[#allocation5] sm:$0xff] %v43
    %46 = vst [vmem:[#allocation5 + $0x8] sm:$0xff] %v44
    // Predicated region
    $region10: #{tpu_custom_call.1} parent=1 // pred_check
      _
    $region11: #{tpu_custom_call.1} parent=1 // pred_check_branch
      %48 = sbr.rel (0) target = $region13
    $region12: #{tpu_custom_call.1} parent=1 // pred_region
      %s50 = ssub.s32 256, 256
      %51 = vsyncadd [#allocation4], %s50
      %s52 = sshll.u32 [#allocation5], 4
      %s53 = int_to_ptr.vmem [resolvable:$true] %s52
      %58 = dma.vmem_to_hbm [thread:$0]  %s53, 256, %s1, [#allocation4], 128, 128, 8
    $region13: #{tpu_custom_call.1} parent=1 // pred_fallthru
      _
    // Predicated region
    $region14: #{tpu_custom_call.1} parent=1 // pred_check
      _
    $region15: #{tpu_custom_call.1} parent=1 // pred_check_branch
      %60 = sbr.rel (0) target = $region17
    $region16: #{tpu_custom_call.1} parent=1 // pred_region
      %61 = dma.done [#allocation4], 256
    $region17: #{tpu_custom_call.1} parent=1 // pred_fallthru
      _
    %62 = vsyncpa [#allocation3], 1
    %63 = vsyncpa [#allocation4], 1

</llo_original>
